<compile_context>
chip_gen: v7x
topology: tpu7x:2x2x1
jax: 0.10.0
libtpu: 0.0.40
codegen_flags: <defaults>
</compile_context>

<pallas_src>
import functools

import jax
import jax.numpy as jnp
from jax import lax
from jax.experimental import pallas as pl
from jax.experimental.pallas import tpu as pltpu


def _emb_gather_kernel(ids_ref, table_hbm, out_hbm, sem, *, tokens_per_step,
                       num_sems, unroll):
    # ids_ref   : SMEM scalar-prefetch ref, flat (padded) token ids.
    # table_hbm : raw HBM ref of the (V, D) embedding table (memory_space=ANY).
    # out_hbm   : raw HBM ref of the (padded_N, D) output (memory_space=ANY).
    # sem       : (K,) DMA semaphores -> K row gathers kept in flight.
    T = tokens_per_step
    K = num_sems
    U = unroll
    base = pl.program_id(0) * T

    def _copy(t, row):
        # Same descriptor (src/dst/sem) is used for both .start() and .wait().
        return pltpu.make_async_copy(
            table_hbm.at[row],          # (D,) contiguous row in HBM
            out_hbm.at[base + t],       # (D,) contiguous row in HBM
            sem.at[t % K])

    def _wait_then_issue(t):
        # Hoist both SMEM id reads ABOVE the wait: .wait() breaks the SMEM
        # sst->sld forwarding path, so reading ids after it would stall the
        # (scalar/descriptor-issue bound) pipeline.
        row_new = ids_ref[base + t]
        row_old = ids_ref[base + t - K]
        _copy(t - K, row_old).wait()
        _copy(t, row_new).start()

    # ---- Prime: put the first K row copies in flight (K <= 64, static unroll).
    for t in range(K):
        _copy(t, ids_ref[base + t]).start()

    # ---- Steady state: retire the oldest in-flight copy, immediately issue
    # the next one -> K contiguous row DMAs outstanding at all times.
    # Manually unrolled by U (static inner loop) so the per-row scalar work
    # (address calc + descriptor push) pipelines back-to-back.
    steady = T - K
    groups, rem = divmod(steady, U)
    if groups > 0:
        def _group(g, carry):
            t0 = K + g * U
            for u in range(U):               # static unroll of U iterations
                _wait_then_issue(t0 + u)
            return carry
        lax.fori_loop(0, groups, _group, 0)
    for u in range(rem):                     # static tail (< U iterations)
        _wait_then_issue(K + groups * U + u)

    # ---- Drain: wait for the last K outstanding copies.
    for t in range(T - K, T):
        _copy(t, ids_ref[base + t]).wait()


def _round_up(x, m):
    return (x + m - 1) // m * m


def embedding_lookup(ids, table, *, tokens_per_step=None, num_sems=32,
                     unroll=8):
    """Pallas embedding gather: returns table[ids] with shape ids.shape + (D,).

    tokens_per_step (T): tokens gathered per grid step (amortizes the ~0.35 us
        per-step overhead).  num_sems (K): DMA ring depth, i.e. number of row
        copies kept in flight (sweep 16-64; 16 is enough on v5e).  unroll:
        static unroll factor of the steady-state issue loop.
    """
    V, D = table.shape
    orig_shape = ids.shape

    # Clamp ids (torch raises on OOB; we avoid an OOB table DMA instead).
    flat_ids = jnp.clip(ids.reshape(-1).astype(jnp.int32), 0, V - 1)
    N = int(flat_ids.shape[0])

    if tokens_per_step is None:
        tokens_per_step = min(512, _round_up(max(N, 1), 8))
    T = int(tokens_per_step)
    assert T % 8 == 0, "tokens_per_step must be a multiple of 8"

    num_chunks = (N + T - 1) // T
    padded_n = num_chunks * T
    if padded_n != N:
        flat_ids = jnp.pad(flat_ids, (0, padded_n - N))  # pad with id 0

    K = max(1, min(int(num_sems), T))
    U = max(1, min(int(unroll), max(T - K, 1)))

    kernel = functools.partial(_emb_gather_kernel, tokens_per_step=T,
                               num_sems=K, unroll=U)

    out = pl.pallas_call(
        kernel,
        out_shape=jax.ShapeDtypeStruct((padded_n, D), table.dtype),
        grid_spec=pltpu.PrefetchScalarGridSpec(
            num_scalar_prefetch=1,            # flat_ids -> SMEM
            grid=(num_chunks,),               # one grid step per T-token chunk
            in_specs=[
                # Table stays in HBM; rows are gathered manually via DMA.
                pl.BlockSpec(memory_space=pl.ANY),
            ],
            # Output stays in HBM; rows are written directly by the gather
            # DMAs (no VMEM staging block, no writeback pass).
            out_specs=pl.BlockSpec(memory_space=pl.ANY),
            scratch_shapes=[pltpu.SemaphoreType.DMA((K,))],
        ),
        compiler_params=pltpu.CompilerParams(
            # Chunks are fully independent -> shard across both TCs on v7x.
            dimension_semantics=("parallel",),
        ),
    )(flat_ids, table)

    if padded_n != N:
        out = out[:N]
    return out.reshape(*orig_shape, D)


if __name__ == "__main__":
    # Small, deterministic setup (full module: VOCAB=32000, DIM=4096).
    VOCAB = 1024
    DIM = 512

    key = jax.random.PRNGKey(0)
    k_table, k_ids1, k_ids2, k_ids3 = jax.random.split(key, 4)

    # torch.nn.Embedding default init: weight ~ N(0, 1)
    table = jax.random.normal(k_table, (VOCAB, DIM), dtype=jnp.float32)

    # Case 1: (2, 8) ids, small chunk (T=8) + small sem ring (K=4) so the
    # prime / steady-state / drain phases and a multi-chunk grid all execute.
    x1 = jax.random.randint(k_ids1, (2, 8), 0, VOCAB, dtype=jnp.int32)
    out1 = jax.block_until_ready(
        embedding_lookup(x1, table, tokens_per_step=8, num_sems=4))
    ref1 = jnp.take(table, x1, axis=0)
    assert out1.shape == (2, 8, DIM), out1.shape
    assert out1.dtype == jnp.float32, out1.dtype
    assert bool(jnp.array_equal(out1, ref1)), "mismatch vs reference (case 1)"

    # Case 2: ragged token count (3*5 = 15) with default params -> exercises
    # padding + trim and the K == T (prime + drain only) path.
    x2 = jax.random.randint(k_ids2, (3, 5), 0, VOCAB, dtype=jnp.int32)
    out2 = jax.block_until_ready(embedding_lookup(x2, table))
    ref2 = jnp.take(table, x2, axis=0)
    assert out2.shape == (3, 5, DIM), out2.shape
    assert bool(jnp.array_equal(out2, ref2)), "mismatch vs reference (case 2)"

    # Case 3: 4*13 = 52 tokens, T=24, K=4 -> 3 chunks with padding; steady
    # state = 20 iters = 2 unroll-groups of 8 + static tail of 4.
    x3 = jax.random.randint(k_ids3, (4, 13), 0, VOCAB, dtype=jnp.int32)
    out3 = jax.block_until_ready(
        embedding_lookup(x3, table, tokens_per_step=24, num_sems=4))
    ref3 = jnp.take(table, x3, axis=0)
    assert out3.shape == (4, 13, DIM), out3.shape
    assert bool(jnp.array_equal(out3, ref3)), "mismatch vs reference (case 3)"

    print("KERNEL_OK")
</pallas_src>

<mosaic_0001>
module attributes {stable_mosaic.version = 11 : i64} {
  func.func @_emb_gather_kernel(%arg0: i32, %arg1: memref<16xi32, #tpu.memory_space<smem>>, %arg2: memref<1024x512xf32, #tpu.memory_space<any>>, %arg3: memref<16x512xf32, #tpu.memory_space<any>>, %arg4: memref<4x!tpu.dma_semaphore, #tpu.memory_space<semaphore_mem>>) attributes {dimension_semantics = [#tpu.dimension_semantics<parallel>], iteration_bounds = array<i64: 2>, scalar_prefetch = 1 : i64, scratch_operands = 1 : i64, tpu.core_type = #tpu.core_type<tc>, window_params = [{}, {}]} {
    %c8_i32 = arith.constant 8 : i32
    %0 = arith.muli %arg0, %c8_i32 : i32
    %c0_i32 = arith.constant 0 : i32
    %1 = arith.addi %0, %c0_i32 : i32
    %2 = arith.index_cast %1 : i32 to index
    %3 = memref.load %arg1[%2] : memref<16xi32, #tpu.memory_space<smem>>
    %c0_i32_0 = arith.constant 0 : i32
    %4 = arith.addi %0, %c0_i32_0 : i32
    %c0_i32_1 = arith.constant 0 : i32
    %c0_i32_2 = arith.constant 0 : i32
    %5 = tpu.memref_slice %arg2[%3, %c0_i32_2] : memref<1024x512xf32, #tpu.memory_space<any>> -> memref<1x512xf32, #tpu.memory_space<any>>
    %6 = tpu.memref_squeeze %5 : memref<1x512xf32, #tpu.memory_space<any>> -> memref<512xf32, #tpu.memory_space<any>>
    %c0_i32_3 = arith.constant 0 : i32
    %7 = tpu.memref_slice %arg3[%4, %c0_i32_3] : memref<16x512xf32, #tpu.memory_space<any>> -> memref<1x512xf32, #tpu.memory_space<any>>
    %8 = tpu.memref_squeeze %7 : memref<1x512xf32, #tpu.memory_space<any>> -> memref<512xf32, #tpu.memory_space<any>>
    %9 = tpu.memref_slice %arg4[%c0_i32_1] : memref<4x!tpu.dma_semaphore, #tpu.memory_space<semaphore_mem>> -> memref<1x!tpu.dma_semaphore, #tpu.memory_space<semaphore_mem>>
    %10 = tpu.memref_squeeze %9 : memref<1x!tpu.dma_semaphore, #tpu.memory_space<semaphore_mem>> -> memref<!tpu.dma_semaphore, #tpu.memory_space<semaphore_mem>>
    tpu.enqueue_dma source(%6 : memref<512xf32, #tpu.memory_space<any>>) target(%8 : memref<512xf32, #tpu.memory_space<any>>) target_semaphore(%10 : memref<!tpu.dma_semaphore, #tpu.memory_space<semaphore_mem>>)
    %c1_i32 = arith.constant 1 : i32
    %11 = arith.addi %0, %c1_i32 : i32
    %12 = arith.index_cast %11 : i32 to index
    %13 = memref.load %arg1[%12] : memref<16xi32, #tpu.memory_space<smem>>
    %c1_i32_4 = arith.constant 1 : i32
    %14 = arith.addi %0, %c1_i32_4 : i32
    %c1_i32_5 = arith.constant 1 : i32
    %c0_i32_6 = arith.constant 0 : i32
    %15 = tpu.memref_slice %arg2[%13, %c0_i32_6] : memref<1024x512xf32, #tpu.memory_space<any>> -> memref<1x512xf32, #tpu.memory_space<any>>
    %16 = tpu.memref_squeeze %15 : memref<1x512xf32, #tpu.memory_space<any>> -> memref<512xf32, #tpu.memory_space<any>>
    %c0_i32_7 = arith.constant 0 : i32
    %17 = tpu.memref_slice %arg3[%14, %c0_i32_7] : memref<16x512xf32, #tpu.memory_space<any>> -> memref<1x512xf32, #tpu.memory_space<any>>
    %18 = tpu.memref_squeeze %17 : memref<1x512xf32, #tpu.memory_space<any>> -> memref<512xf32, #tpu.memory_space<any>>
    %19 = tpu.memref_slice %arg4[%c1_i32_5] : memref<4x!tpu.dma_semaphore, #tpu.memory_space<semaphore_mem>> -> memref<1x!tpu.dma_semaphore, #tpu.memory_space<semaphore_mem>>
    %20 = tpu.memref_squeeze %19 : memref<1x!tpu.dma_semaphore, #tpu.memory_space<semaphore_mem>> -> memref<!tpu.dma_semaphore, #tpu.memory_space<semaphore_mem>>
    tpu.enqueue_dma source(%16 : memref<512xf32, #tpu.memory_space<any>>) target(%18 : memref<512xf32, #tpu.memory_space<any>>) target_semaphore(%20 : memref<!tpu.dma_semaphore, #tpu.memory_space<semaphore_mem>>)
    %c2_i32 = arith.constant 2 : i32
    %21 = arith.addi %0, %c2_i32 : i32
    %22 = arith.index_cast %21 : i32 to index
    %23 = memref.load %arg1[%22] : memref<16xi32, #tpu.memory_space<smem>>
    %c2_i32_8 = arith.constant 2 : i32
    %24 = arith.addi %0, %c2_i32_8 : i32
    %c2_i32_9 = arith.constant 2 : i32
    %c0_i32_10 = arith.constant 0 : i32
    %25 = tpu.memref_slice %arg2[%23, %c0_i32_10] : memref<1024x512xf32, #tpu.memory_space<any>> -> memref<1x512xf32, #tpu.memory_space<any>>
    %26 = tpu.memref_squeeze %25 : memref<1x512xf32, #tpu.memory_space<any>> -> memref<512xf32, #tpu.memory_space<any>>
    %c0_i32_11 = arith.constant 0 : i32
    %27 = tpu.memref_slice %arg3[%24, %c0_i32_11] : memref<16x512xf32, #tpu.memory_space<any>> -> memref<1x512xf32, #tpu.memory_space<any>>
    %28 = tpu.memref_squeeze %27 : memref<1x512xf32, #tpu.memory_space<any>> -> memref<512xf32, #tpu.memory_space<any>>
    %29 = tpu.memref_slice %arg4[%c2_i32_9] : memref<4x!tpu.dma_semaphore, #tpu.memory_space<semaphore_mem>> -> memref<1x!tpu.dma_semaphore, #tpu.memory_space<semaphore_mem>>
    %30 = tpu.memref_squeeze %29 : memref<1x!tpu.dma_semaphore, #tpu.memory_space<semaphore_mem>> -> memref<!tpu.dma_semaphore, #tpu.memory_space<semaphore_mem>>
    tpu.enqueue_dma source(%26 : memref<512xf32, #tpu.memory_space<any>>) target(%28 : memref<512xf32, #tpu.memory_space<any>>) target_semaphore(%30 : memref<!tpu.dma_semaphore, #tpu.memory_space<semaphore_mem>>)
    %c3_i32 = arith.constant 3 : i32
    %31 = arith.addi %0, %c3_i32 : i32
    %32 = arith.index_cast %31 : i32 to index
    %33 = memref.load %arg1[%32] : memref<16xi32, #tpu.memory_space<smem>>
    %c3_i32_12 = arith.constant 3 : i32
    %34 = arith.addi %0, %c3_i32_12 : i32
    %c3_i32_13 = arith.constant 3 : i32
    %c0_i32_14 = arith.constant 0 : i32
    %35 = tpu.memref_slice %arg2[%33, %c0_i32_14] : memref<1024x512xf32, #tpu.memory_space<any>> -> memref<1x512xf32, #tpu.memory_space<any>>
    %36 = tpu.memref_squeeze %35 : memref<1x512xf32, #tpu.memory_space<any>> -> memref<512xf32, #tpu.memory_space<any>>
    %c0_i32_15 = arith.constant 0 : i32
    %37 = tpu.memref_slice %arg3[%34, %c0_i32_15] : memref<16x512xf32, #tpu.memory_space<any>> -> memref<1x512xf32, #tpu.memory_space<any>>
    %38 = tpu.memref_squeeze %37 : memref<1x512xf32, #tpu.memory_space<any>> -> memref<512xf32, #tpu.memory_space<any>>
    %39 = tpu.memref_slice %arg4[%c3_i32_13] : memref<4x!tpu.dma_semaphore, #tpu.memory_space<semaphore_mem>> -> memref<1x!tpu.dma_semaphore, #tpu.memory_space<semaphore_mem>>
    %40 = tpu.memref_squeeze %39 : memref<1x!tpu.dma_semaphore, #tpu.memory_space<semaphore_mem>> -> memref<!tpu.dma_semaphore, #tpu.memory_space<semaphore_mem>>
    tpu.enqueue_dma source(%36 : memref<512xf32, #tpu.memory_space<any>>) target(%38 : memref<512xf32, #tpu.memory_space<any>>) target_semaphore(%40 : memref<!tpu.dma_semaphore, #tpu.memory_space<semaphore_mem>>)
    %c0_i32_16 = arith.constant 0 : i32
    %c4_i32 = arith.constant 4 : i32
    %41 = arith.muli %c0_i32_16, %c4_i32 : i32
    %c4_i32_17 = arith.constant 4 : i32
    %42 = arith.addi %c4_i32_17, %41 : i32
    %c0_i32_18 = arith.constant 0 : i32
    %43 = arith.addi %42, %c0_i32_18 : i32
    %44 = arith.addi %0, %43 : i32
    %45 = arith.index_cast %44 : i32 to index
    %46 = memref.load %arg1[%45] : memref<16xi32, #tpu.memory_space<smem>>
    %47 = arith.addi %0, %43 : i32
    %c4_i32_19 = arith.constant 4 : i32
    %48 = arith.subi %47, %c4_i32_19 : i32
    %49 = arith.index_cast %48 : i32 to index
    %50 = memref.load %arg1[%49] : memref<16xi32, #tpu.memory_space<smem>>
    %c4_i32_20 = arith.constant 4 : i32
    %51 = arith.subi %43, %c4_i32_20 : i32
    %52 = arith.addi %0, %51 : i32
    %c4_i32_21 = arith.constant 4 : i32
    %c0_i32_22 = arith.constant 0 : i32
    %53 = arith.cmpi eq, %c4_i32_21, %c0_i32_22 : i32
    %c1_i32_23 = arith.constant 1 : i32
    %54 = arith.select %53, %c1_i32_23, %c4_i32_21 : i32
    %55 = arith.remsi %51, %54 : i32
    %c0_i32_24 = arith.constant 0 : i32
    %56 = arith.cmpi ne, %55, %c0_i32_24 : i32
    %c0_i32_25 = arith.constant 0 : i32
    %57 = arith.cmpi slt, %55, %c0_i32_25 : i32
    %c0_i32_26 = arith.constant 0 : i32
    %58 = arith.cmpi slt, %54, %c0_i32_26 : i32
    %59 = arith.xori %57, %58 : i1
    %60 = arith.andi %59, %56 : i1
    %61 = arith.addi %55, %54 : i32
    %62 = arith.select %60, %61, %55 : i32
    %c0_i32_27 = arith.constant 0 : i32
    %63 = tpu.memref_slice %arg2[%50, %c0_i32_27] : memref<1024x512xf32, #tpu.memory_space<any>> -> memref<1x512xf32, #tpu.memory_space<any>>
    %64 = tpu.memref_squeeze %63 : memref<1x512xf32, #tpu.memory_space<any>> -> memref<512xf32, #tpu.memory_space<any>>
    %c0_i32_28 = arith.constant 0 : i32
    %65 = tpu.memref_slice %arg3[%52, %c0_i32_28] : memref<16x512xf32, #tpu.memory_space<any>> -> memref<1x512xf32, #tpu.memory_space<any>>
    %66 = tpu.memref_squeeze %65 : memref<1x512xf32, #tpu.memory_space<any>> -> memref<512xf32, #tpu.memory_space<any>>
    %67 = tpu.memref_slice %arg4[%62] : memref<4x!tpu.dma_semaphore, #tpu.memory_space<semaphore_mem>> -> memref<1x!tpu.dma_semaphore, #tpu.memory_space<semaphore_mem>>
    %68 = tpu.memref_squeeze %67 : memref<1x!tpu.dma_semaphore, #tpu.memory_space<semaphore_mem>> -> memref<!tpu.dma_semaphore, #tpu.memory_space<semaphore_mem>>
    tpu.wait_dma2 semaphore(%68 : memref<!tpu.dma_semaphore, #tpu.memory_space<semaphore_mem>>) src(%64 : memref<512xf32, #tpu.memory_space<any>>) dst(%66 : memref<512xf32, #tpu.memory_space<any>>)
    %69 = arith.addi %0, %43 : i32
    %c4_i32_29 = arith.constant 4 : i32
    %c0_i32_30 = arith.constant 0 : i32
    %70 = arith.cmpi eq, %c4_i32_29, %c0_i32_30 : i32
    %c1_i32_31 = arith.constant 1 : i32
    %71 = arith.select %70, %c1_i32_31, %c4_i32_29 : i32
    %72 = arith.remsi %43, %71 : i32
    %c0_i32_32 = arith.constant 0 : i32
    %73 = arith.cmpi ne, %72, %c0_i32_32 : i32
    %c0_i32_33 = arith.constant 0 : i32
    %74 = arith.cmpi slt, %72, %c0_i32_33 : i32
    %c0_i32_34 = arith.constant 0 : i32
    %75 = arith.cmpi slt, %71, %c0_i32_34 : i32
    %76 = arith.xori %74, %75 : i1
    %77 = arith.andi %76, %73 : i1
    %78 = arith.addi %72, %71 : i32
    %79 = arith.select %77, %78, %72 : i32
    %c0_i32_35 = arith.constant 0 : i32
    %80 = tpu.memref_slice %arg2[%46, %c0_i32_35] : memref<1024x512xf32, #tpu.memory_space<any>> -> memref<1x512xf32, #tpu.memory_space<any>>
    %81 = tpu.memref_squeeze %80 : memref<1x512xf32, #tpu.memory_space<any>> -> memref<512xf32, #tpu.memory_space<any>>
    %c0_i32_36 = arith.constant 0 : i32
    %82 = tpu.memref_slice %arg3[%69, %c0_i32_36] : memref<16x512xf32, #tpu.memory_space<any>> -> memref<1x512xf32, #tpu.memory_space<any>>
    %83 = tpu.memref_squeeze %82 : memref<1x512xf32, #tpu.memory_space<any>> -> memref<512xf32, #tpu.memory_space<any>>
    %84 = tpu.memref_slice %arg4[%79] : memref<4x!tpu.dma_semaphore, #tpu.memory_space<semaphore_mem>> -> memref<1x!tpu.dma_semaphore, #tpu.memory_space<semaphore_mem>>
    %85 = tpu.memref_squeeze %84 : memref<1x!tpu.dma_semaphore, #tpu.memory_space<semaphore_mem>> -> memref<!tpu.dma_semaphore, #tpu.memory_space<semaphore_mem>>
    tpu.enqueue_dma source(%81 : memref<512xf32, #tpu.memory_space<any>>) target(%83 : memref<512xf32, #tpu.memory_space<any>>) target_semaphore(%85 : memref<!tpu.dma_semaphore, #tpu.memory_space<semaphore_mem>>)
    %c1_i32_37 = arith.constant 1 : i32
    %86 = arith.addi %42, %c1_i32_37 : i32
    %87 = arith.addi %0, %86 : i32
    %88 = arith.index_cast %87 : i32 to index
    %89 = memref.load %arg1[%88] : memref<16xi32, #tpu.memory_space<smem>>
    %90 = arith.addi %0, %86 : i32
    %c4_i32_38 = arith.constant 4 : i32
    %91 = arith.subi %90, %c4_i32_38 : i32
    %92 = arith.index_cast %91 : i32 to index
    %93 = memref.load %arg1[%92] : memref<16xi32, #tpu.memory_space<smem>>
    %c4_i32_39 = arith.constant 4 : i32
    %94 = arith.subi %86, %c4_i32_39 : i32
    %95 = arith.addi %0, %94 : i32
    %c4_i32_40 = arith.constant 4 : i32
    %c0_i32_41 = arith.constant 0 : i32
    %96 = arith.cmpi eq, %c4_i32_40, %c0_i32_41 : i32
    %c1_i32_42 = arith.constant 1 : i32
    %97 = arith.select %96, %c1_i32_42, %c4_i32_40 : i32
    %98 = arith.remsi %94, %97 : i32
    %c0_i32_43 = arith.constant 0 : i32
    %99 = arith.cmpi ne, %98, %c0_i32_43 : i32
    %c0_i32_44 = arith.constant 0 : i32
    %100 = arith.cmpi slt, %98, %c0_i32_44 : i32
    %c0_i32_45 = arith.constant 0 : i32
    %101 = arith.cmpi slt, %97, %c0_i32_45 : i32
    %102 = arith.xori %100, %101 : i1
    %103 = arith.andi %102, %99 : i1
    %104 = arith.addi %98, %97 : i32
    %105 = arith.select %103, %104, %98 : i32
    %c0_i32_46 = arith.constant 0 : i32
    %106 = tpu.memref_slice %arg2[%93, %c0_i32_46] : memref<1024x512xf32, #tpu.memory_space<any>> -> memref<1x512xf32, #tpu.memory_space<any>>
    %107 = tpu.memref_squeeze %106 : memref<1x512xf32, #tpu.memory_space<any>> -> memref<512xf32, #tpu.memory_space<any>>
    %c0_i32_47 = arith.constant 0 : i32
    %108 = tpu.memref_slice %arg3[%95, %c0_i32_47] : memref<16x512xf32, #tpu.memory_space<any>> -> memref<1x512xf32, #tpu.memory_space<any>>
    %109 = tpu.memref_squeeze %108 : memref<1x512xf32, #tpu.memory_space<any>> -> memref<512xf32, #tpu.memory_space<any>>
    %110 = tpu.memref_slice %arg4[%105] : memref<4x!tpu.dma_semaphore, #tpu.memory_space<semaphore_mem>> -> memref<1x!tpu.dma_semaphore, #tpu.memory_space<semaphore_mem>>
    %111 = tpu.memref_squeeze %110 : memref<1x!tpu.dma_semaphore, #tpu.memory_space<semaphore_mem>> -> memref<!tpu.dma_semaphore, #tpu.memory_space<semaphore_mem>>
    tpu.wait_dma2 semaphore(%111 : memref<!tpu.dma_semaphore, #tpu.memory_space<semaphore_mem>>) src(%107 : memref<512xf32, #tpu.memory_space<any>>) dst(%109 : memref<512xf32, #tpu.memory_space<any>>)
    %112 = arith.addi %0, %86 : i32
    %c4_i32_48 = arith.constant 4 : i32
    %c0_i32_49 = arith.constant 0 : i32
    %113 = arith.cmpi eq, %c4_i32_48, %c0_i32_49 : i32
    %c1_i32_50 = arith.constant 1 : i32
    %114 = arith.select %113, %c1_i32_50, %c4_i32_48 : i32
    %115 = arith.remsi %86, %114 : i32
    %c0_i32_51 = arith.constant 0 : i32
    %116 = arith.cmpi ne, %115, %c0_i32_51 : i32
    %c0_i32_52 = arith.constant 0 : i32
    %117 = arith.cmpi slt, %115, %c0_i32_52 : i32
    %c0_i32_53 = arith.constant 0 : i32
    %118 = arith.cmpi slt, %114, %c0_i32_53 : i32
    %119 = arith.xori %117, %118 : i1
    %120 = arith.andi %119, %116 : i1
    %121 = arith.addi %115, %114 : i32
    %122 = arith.select %120, %121, %115 : i32
    %c0_i32_54 = arith.constant 0 : i32
    %123 = tpu.memref_slice %arg2[%89, %c0_i32_54] : memref<1024x512xf32, #tpu.memory_space<any>> -> memref<1x512xf32, #tpu.memory_space<any>>
    %124 = tpu.memref_squeeze %123 : memref<1x512xf32, #tpu.memory_space<any>> -> memref<512xf32, #tpu.memory_space<any>>
    %c0_i32_55 = arith.constant 0 : i32
    %125 = tpu.memref_slice %arg3[%112, %c0_i32_55] : memref<16x512xf32, #tpu.memory_space<any>> -> memref<1x512xf32, #tpu.memory_space<any>>
    %126 = tpu.memref_squeeze %125 : memref<1x512xf32, #tpu.memory_space<any>> -> memref<512xf32, #tpu.memory_space<any>>
    %127 = tpu.memref_slice %arg4[%122] : memref<4x!tpu.dma_semaphore, #tpu.memory_space<semaphore_mem>> -> memref<1x!tpu.dma_semaphore, #tpu.memory_space<semaphore_mem>>
    %128 = tpu.memref_squeeze %127 : memref<1x!tpu.dma_semaphore, #tpu.memory_space<semaphore_mem>> -> memref<!tpu.dma_semaphore, #tpu.memory_space<semaphore_mem>>
    tpu.enqueue_dma source(%124 : memref<512xf32, #tpu.memory_space<any>>) target(%126 : memref<512xf32, #tpu.memory_space<any>>) target_semaphore(%128 : memref<!tpu.dma_semaphore, #tpu.memory_space<semaphore_mem>>)
    %c2_i32_56 = arith.constant 2 : i32
    %129 = arith.addi %42, %c2_i32_56 : i32
    %130 = arith.addi %0, %129 : i32
    %131 = arith.index_cast %130 : i32 to index
    %132 = memref.load %arg1[%131] : memref<16xi32, #tpu.memory_space<smem>>
    %133 = arith.addi %0, %129 : i32
    %c4_i32_57 = arith.constant 4 : i32
    %134 = arith.subi %133, %c4_i32_57 : i32
    %135 = arith.index_cast %134 : i32 to index
    %136 = memref.load %arg1[%135] : memref<16xi32, #tpu.memory_space<smem>>
    %c4_i32_58 = arith.constant 4 : i32
    %137 = arith.subi %129, %c4_i32_58 : i32
    %138 = arith.addi %0, %137 : i32
    %c4_i32_59 = arith.constant 4 : i32
    %c0_i32_60 = arith.constant 0 : i32
    %139 = arith.cmpi eq, %c4_i32_59, %c0_i32_60 : i32
    %c1_i32_61 = arith.constant 1 : i32
    %140 = arith.select %139, %c1_i32_61, %c4_i32_59 : i32
    %141 = arith.remsi %137, %140 : i32
    %c0_i32_62 = arith.constant 0 : i32
    %142 = arith.cmpi ne, %141, %c0_i32_62 : i32
    %c0_i32_63 = arith.constant 0 : i32
    %143 = arith.cmpi slt, %141, %c0_i32_63 : i32
    %c0_i32_64 = arith.constant 0 : i32
    %144 = arith.cmpi slt, %140, %c0_i32_64 : i32
    %145 = arith.xori %143, %144 : i1
    %146 = arith.andi %145, %142 : i1
    %147 = arith.addi %141, %140 : i32
    %148 = arith.select %146, %147, %141 : i32
    %c0_i32_65 = arith.constant 0 : i32
    %149 = tpu.memref_slice %arg2[%136, %c0_i32_65] : memref<1024x512xf32, #tpu.memory_space<any>> -> memref<1x512xf32, #tpu.memory_space<any>>
    %150 = tpu.memref_squeeze %149 : memref<1x512xf32, #tpu.memory_space<any>> -> memref<512xf32, #tpu.memory_space<any>>
    %c0_i32_66 = arith.constant 0 : i32
    %151 = tpu.memref_slice %arg3[%138, %c0_i32_66] : memref<16x512xf32, #tpu.memory_space<any>> -> memref<1x512xf32, #tpu.memory_space<any>>
    %152 = tpu.memref_squeeze %151 : memref<1x512xf32, #tpu.memory_space<any>> -> memref<512xf32, #tpu.memory_space<any>>
    %153 = tpu.memref_slice %arg4[%148] : memref<4x!tpu.dma_semaphore, #tpu.memory_space<semaphore_mem>> -> memref<1x!tpu.dma_semaphore, #tpu.memory_space<semaphore_mem>>
    %154 = tpu.memref_squeeze %153 : memref<1x!tpu.dma_semaphore, #tpu.memory_space<semaphore_mem>> -> memref<!tpu.dma_semaphore, #tpu.memory_space<semaphore_mem>>
    tpu.wait_dma2 semaphore(%154 : memref<!tpu.dma_semaphore, #tpu.memory_space<semaphore_mem>>) src(%150 : memref<512xf32, #tpu.memory_space<any>>) dst(%152 : memref<512xf32, #tpu.memory_space<any>>)
    %155 = arith.addi %0, %129 : i32
    %c4_i32_67 = arith.constant 4 : i32
    %c0_i32_68 = arith.constant 0 : i32
    %156 = arith.cmpi eq, %c4_i32_67, %c0_i32_68 : i32
    %c1_i32_69 = arith.constant 1 : i32
    %157 = arith.select %156, %c1_i32_69, %c4_i32_67 : i32
    %158 = arith.remsi %129, %157 : i32
    %c0_i32_70 = arith.constant 0 : i32
    %159 = arith.cmpi ne, %158, %c0_i32_70 : i32
    %c0_i32_71 = arith.constant 0 : i32
    %160 = arith.cmpi slt, %158, %c0_i32_71 : i32
    %c0_i32_72 = arith.constant 0 : i32
    %161 = arith.cmpi slt, %157, %c0_i32_72 : i32
    %162 = arith.xori %160, %161 : i1
    %163 = arith.andi %162, %159 : i1
    %164 = arith.addi %158, %157 : i32
    %165 = arith.select %163, %164, %158 : i32
    %c0_i32_73 = arith.constant 0 : i32
    %166 = tpu.memref_slice %arg2[%132, %c0_i32_73] : memref<1024x512xf32, #tpu.memory_space<any>> -> memref<1x512xf32, #tpu.memory_space<any>>
    %167 = tpu.memref_squeeze %166 : memref<1x512xf32, #tpu.memory_space<any>> -> memref<512xf32, #tpu.memory_space<any>>
    %c0_i32_74 = arith.constant 0 : i32
    %168 = tpu.memref_slice %arg3[%155, %c0_i32_74] : memref<16x512xf32, #tpu.memory_space<any>> -> memref<1x512xf32, #tpu.memory_space<any>>
    %169 = tpu.memref_squeeze %168 : memref<1x512xf32, #tpu.memory_space<any>> -> memref<512xf32, #tpu.memory_space<any>>
    %170 = tpu.memref_slice %arg4[%165] : memref<4x!tpu.dma_semaphore, #tpu.memory_space<semaphore_mem>> -> memref<1x!tpu.dma_semaphore, #tpu.memory_space<semaphore_mem>>
    %171 = tpu.memref_squeeze %170 : memref<1x!tpu.dma_semaphore, #tpu.memory_space<semaphore_mem>> -> memref<!tpu.dma_semaphore, #tpu.memory_space<semaphore_mem>>
    tpu.enqueue_dma source(%167 : memref<512xf32, #tpu.memory_space<any>>) target(%169 : memref<512xf32, #tpu.memory_space<any>>) target_semaphore(%171 : memref<!tpu.dma_semaphore, #tpu.memory_space<semaphore_mem>>)
    %c3_i32_75 = arith.constant 3 : i32
    %172 = arith.addi %42, %c3_i32_75 : i32
    %173 = arith.addi %0, %172 : i32
    %174 = arith.index_cast %173 : i32 to index
    %175 = memref.load %arg1[%174] : memref<16xi32, #tpu.memory_space<smem>>
    %176 = arith.addi %0, %172 : i32
    %c4_i32_76 = arith.constant 4 : i32
    %177 = arith.subi %176, %c4_i32_76 : i32
    %178 = arith.index_cast %177 : i32 to index
    %179 = memref.load %arg1[%178] : memref<16xi32, #tpu.memory_space<smem>>
    %c4_i32_77 = arith.constant 4 : i32
    %180 = arith.subi %172, %c4_i32_77 : i32
    %181 = arith.addi %0, %180 : i32
    %c4_i32_78 = arith.constant 4 : i32
    %c0_i32_79 = arith.constant 0 : i32
    %182 = arith.cmpi eq, %c4_i32_78, %c0_i32_79 : i32
    %c1_i32_80 = arith.constant 1 : i32
    %183 = arith.select %182, %c1_i32_80, %c4_i32_78 : i32
    %184 = arith.remsi %180, %183 : i32
    %c0_i32_81 = arith.constant 0 : i32
    %185 = arith.cmpi ne, %184, %c0_i32_81 : i32
    %c0_i32_82 = arith.constant 0 : i32
    %186 = arith.cmpi slt, %184, %c0_i32_82 : i32
    %c0_i32_83 = arith.constant 0 : i32
    %187 = arith.cmpi slt, %183, %c0_i32_83 : i32
    %188 = arith.xori %186, %187 : i1
    %189 = arith.andi %188, %185 : i1
    %190 = arith.addi %184, %183 : i32
    %191 = arith.select %189, %190, %184 : i32
    %c0_i32_84 = arith.constant 0 : i32
    %192 = tpu.memref_slice %arg2[%179, %c0_i32_84] : memref<1024x512xf32, #tpu.memory_space<any>> -> memref<1x512xf32, #tpu.memory_space<any>>
    %193 = tpu.memref_squeeze %192 : memref<1x512xf32, #tpu.memory_space<any>> -> memref<512xf32, #tpu.memory_space<any>>
    %c0_i32_85 = arith.constant 0 : i32
    %194 = tpu.memref_slice %arg3[%181, %c0_i32_85] : memref<16x512xf32, #tpu.memory_space<any>> -> memref<1x512xf32, #tpu.memory_space<any>>
    %195 = tpu.memref_squeeze %194 : memref<1x512xf32, #tpu.memory_space<any>> -> memref<512xf32, #tpu.memory_space<any>>
    %196 = tpu.memref_slice %arg4[%191] : memref<4x!tpu.dma_semaphore, #tpu.memory_space<semaphore_mem>> -> memref<1x!tpu.dma_semaphore, #tpu.memory_space<semaphore_mem>>
    %197 = tpu.memref_squeeze %196 : memref<1x!tpu.dma_semaphore, #tpu.memory_space<semaphore_mem>> -> memref<!tpu.dma_semaphore, #tpu.memory_space<semaphore_mem>>
    tpu.wait_dma2 semaphore(%197 : memref<!tpu.dma_semaphore, #tpu.memory_space<semaphore_mem>>) src(%193 : memref<512xf32, #tpu.memory_space<any>>) dst(%195 : memref<512xf32, #tpu.memory_space<any>>)
    %198 = arith.addi %0, %172 : i32
    %c4_i32_86 = arith.constant 4 : i32
    %c0_i32_87 = arith.constant 0 : i32
    %199 = arith.cmpi eq, %c4_i32_86, %c0_i32_87 : i32
    %c1_i32_88 = arith.constant 1 : i32
    %200 = arith.select %199, %c1_i32_88, %c4_i32_86 : i32
    %201 = arith.remsi %172, %200 : i32
    %c0_i32_89 = arith.constant 0 : i32
    %202 = arith.cmpi ne, %201, %c0_i32_89 : i32
    %c0_i32_90 = arith.constant 0 : i32
    %203 = arith.cmpi slt, %201, %c0_i32_90 : i32
    %c0_i32_91 = arith.constant 0 : i32
    %204 = arith.cmpi slt, %200, %c0_i32_91 : i32
    %205 = arith.xori %203, %204 : i1
    %206 = arith.andi %205, %202 : i1
    %207 = arith.addi %201, %200 : i32
    %208 = arith.select %206, %207, %201 : i32
    %c0_i32_92 = arith.constant 0 : i32
    %209 = tpu.memref_slice %arg2[%175, %c0_i32_92] : memref<1024x512xf32, #tpu.memory_space<any>> -> memref<1x512xf32, #tpu.memory_space<any>>
    %210 = tpu.memref_squeeze %209 : memref<1x512xf32, #tpu.memory_space<any>> -> memref<512xf32, #tpu.memory_space<any>>
    %c0_i32_93 = arith.constant 0 : i32
    %211 = tpu.memref_slice %arg3[%198, %c0_i32_93] : memref<16x512xf32, #tpu.memory_space<any>> -> memref<1x512xf32, #tpu.memory_space<any>>
    %212 = tpu.memref_squeeze %211 : memref<1x512xf32, #tpu.memory_space<any>> -> memref<512xf32, #tpu.memory_space<any>>
    %213 = tpu.memref_slice %arg4[%208] : memref<4x!tpu.dma_semaphore, #tpu.memory_space<semaphore_mem>> -> memref<1x!tpu.dma_semaphore, #tpu.memory_space<semaphore_mem>>
    %214 = tpu.memref_squeeze %213 : memref<1x!tpu.dma_semaphore, #tpu.memory_space<semaphore_mem>> -> memref<!tpu.dma_semaphore, #tpu.memory_space<semaphore_mem>>
    tpu.enqueue_dma source(%210 : memref<512xf32, #tpu.memory_space<any>>) target(%212 : memref<512xf32, #tpu.memory_space<any>>) target_semaphore(%214 : memref<!tpu.dma_semaphore, #tpu.memory_space<semaphore_mem>>)
    %c1_i32_94 = arith.constant 1 : i32
    %c4_i32_95 = arith.constant 4 : i32
    %215 = arith.addi %0, %c4_i32_95 : i32
    %216 = arith.index_cast %215 : i32 to index
    %217 = memref.load %arg1[%216] : memref<16xi32, #tpu.memory_space<smem>>
    %c4_i32_96 = arith.constant 4 : i32
    %218 = arith.addi %0, %c4_i32_96 : i32
    %c0_i32_97 = arith.constant 0 : i32
    %c0_i32_98 = arith.constant 0 : i32
    %219 = tpu.memref_slice %arg2[%217, %c0_i32_98] : memref<1024x512xf32, #tpu.memory_space<any>> -> memref<1x512xf32, #tpu.memory_space<any>>
    %220 = tpu.memref_squeeze %219 : memref<1x512xf32, #tpu.memory_space<any>> -> memref<512xf32, #tpu.memory_space<any>>
    %c0_i32_99 = arith.constant 0 : i32
    %221 = tpu.memref_slice %arg3[%218, %c0_i32_99] : memref<16x512xf32, #tpu.memory_space<any>> -> memref<1x512xf32, #tpu.memory_space<any>>
    %222 = tpu.memref_squeeze %221 : memref<1x512xf32, #tpu.memory_space<any>> -> memref<512xf32, #tpu.memory_space<any>>
    %223 = tpu.memref_slice %arg4[%c0_i32_97] : memref<4x!tpu.dma_semaphore, #tpu.memory_space<semaphore_mem>> -> memref<1x!tpu.dma_semaphore, #tpu.memory_space<semaphore_mem>>
    %224 = tpu.memref_squeeze %223 : memref<1x!tpu.dma_semaphore, #tpu.memory_space<semaphore_mem>> -> memref<!tpu.dma_semaphore, #tpu.memory_space<semaphore_mem>>
    tpu.wait_dma2 semaphore(%224 : memref<!tpu.dma_semaphore, #tpu.memory_space<semaphore_mem>>) src(%220 : memref<512xf32, #tpu.memory_space<any>>) dst(%222 : memref<512xf32, #tpu.memory_space<any>>)
    %c5_i32 = arith.constant 5 : i32
    %225 = arith.addi %0, %c5_i32 : i32
    %226 = arith.index_cast %225 : i32 to index
    %227 = memref.load %arg1[%226] : memref<16xi32, #tpu.memory_space<smem>>
    %c5_i32_100 = arith.constant 5 : i32
    %228 = arith.addi %0, %c5_i32_100 : i32
    %c1_i32_101 = arith.constant 1 : i32
    %c0_i32_102 = arith.constant 0 : i32
    %229 = tpu.memref_slice %arg2[%227, %c0_i32_102] : memref<1024x512xf32, #tpu.memory_space<any>> -> memref<1x512xf32, #tpu.memory_space<any>>
    %230 = tpu.memref_squeeze %229 : memref<1x512xf32, #tpu.memory_space<any>> -> memref<512xf32, #tpu.memory_space<any>>
    %c0_i32_103 = arith.constant 0 : i32
    %231 = tpu.memref_slice %arg3[%228, %c0_i32_103] : memref<16x512xf32, #tpu.memory_space<any>> -> memref<1x512xf32, #tpu.memory_space<any>>
    %232 = tpu.memref_squeeze %231 : memref<1x512xf32, #tpu.memory_space<any>> -> memref<512xf32, #tpu.memory_space<any>>
    %233 = tpu.memref_slice %arg4[%c1_i32_101] : memref<4x!tpu.dma_semaphore, #tpu.memory_space<semaphore_mem>> -> memref<1x!tpu.dma_semaphore, #tpu.memory_space<semaphore_mem>>
    %234 = tpu.memref_squeeze %233 : memref<1x!tpu.dma_semaphore, #tpu.memory_space<semaphore_mem>> -> memref<!tpu.dma_semaphore, #tpu.memory_space<semaphore_mem>>
    tpu.wait_dma2 semaphore(%234 : memref<!tpu.dma_semaphore, #tpu.memory_space<semaphore_mem>>) src(%230 : memref<512xf32, #tpu.memory_space<any>>) dst(%232 : memref<512xf32, #tpu.memory_space<any>>)
    %c6_i32 = arith.constant 6 : i32
    %235 = arith.addi %0, %c6_i32 : i32
    %236 = arith.index_cast %235 : i32 to index
    %237 = memref.load %arg1[%236] : memref<16xi32, #tpu.memory_space<smem>>
    %c6_i32_104 = arith.constant 6 : i32
    %238 = arith.addi %0, %c6_i32_104 : i32
    %c2_i32_105 = arith.constant 2 : i32
    %c0_i32_106 = arith.constant 0 : i32
    %239 = tpu.memref_slice %arg2[%237, %c0_i32_106] : memref<1024x512xf32, #tpu.memory_space<any>> -> memref<1x512xf32, #tpu.memory_space<any>>
    %240 = tpu.memref_squeeze %239 : memref<1x512xf32, #tpu.memory_space<any>> -> memref<512xf32, #tpu.memory_space<any>>
    %c0_i32_107 = arith.constant 0 : i32
    %241 = tpu.memref_slice %arg3[%238, %c0_i32_107] : memref<16x512xf32, #tpu.memory_space<any>> -> memref<1x512xf32, #tpu.memory_space<any>>
    %242 = tpu.memref_squeeze %241 : memref<1x512xf32, #tpu.memory_space<any>> -> memref<512xf32, #tpu.memory_space<any>>
    %243 = tpu.memref_slice %arg4[%c2_i32_105] : memref<4x!tpu.dma_semaphore, #tpu.memory_space<semaphore_mem>> -> memref<1x!tpu.dma_semaphore, #tpu.memory_space<semaphore_mem>>
    %244 = tpu.memref_squeeze %243 : memref<1x!tpu.dma_semaphore, #tpu.memory_space<semaphore_mem>> -> memref<!tpu.dma_semaphore, #tpu.memory_space<semaphore_mem>>
    tpu.wait_dma2 semaphore(%244 : memref<!tpu.dma_semaphore, #tpu.memory_space<semaphore_mem>>) src(%240 : memref<512xf32, #tpu.memory_space<any>>) dst(%242 : memref<512xf32, #tpu.memory_space<any>>)
    %c7_i32 = arith.constant 7 : i32
    %245 = arith.addi %0, %c7_i32 : i32
    %246 = arith.index_cast %245 : i32 to index
    %247 = memref.load %arg1[%246] : memref<16xi32, #tpu.memory_space<smem>>
    %c7_i32_108 = arith.constant 7 : i32
    %248 = arith.addi %0, %c7_i32_108 : i32
    %c3_i32_109 = arith.constant 3 : i32
    %c0_i32_110 = arith.constant 0 : i32
    %249 = tpu.memref_slice %arg2[%247, %c0_i32_110] : memref<1024x512xf32, #tpu.memory_space<any>> -> memref<1x512xf32, #tpu.memory_space<any>>
    %250 = tpu.memref_squeeze %249 : memref<1x512xf32, #tpu.memory_space<any>> -> memref<512xf32, #tpu.memory_space<any>>
    %c0_i32_111 = arith.constant 0 : i32
    %251 = tpu.memref_slice %arg3[%248, %c0_i32_111] : memref<16x512xf32, #tpu.memory_space<any>> -> memref<1x512xf32, #tpu.memory_space<any>>
    %252 = tpu.memref_squeeze %251 : memref<1x512xf32, #tpu.memory_space<any>> -> memref<512xf32, #tpu.memory_space<any>>
    %253 = tpu.memref_slice %arg4[%c3_i32_109] : memref<4x!tpu.dma_semaphore, #tpu.memory_space<semaphore_mem>> -> memref<1x!tpu.dma_semaphore, #tpu.memory_space<semaphore_mem>>
    %254 = tpu.memref_squeeze %253 : memref<1x!tpu.dma_semaphore, #tpu.memory_space<semaphore_mem>> -> memref<!tpu.dma_semaphore, #tpu.memory_space<semaphore_mem>>
    tpu.wait_dma2 semaphore(%254 : memref<!tpu.dma_semaphore, #tpu.memory_space<semaphore_mem>>) src(%250 : memref<512xf32, #tpu.memory_space<any>>) dst(%252 : memref<512xf32, #tpu.memory_space<any>>)
    return
  }
}

</mosaic_0001>

<llo_original>
// kernel: tpu_custom_call.1
$region0: #{tpu_custom_call.1}
  #allocation0 [shape = 'u32[]', space=smem, size = 0x4, offset = 0x4, fixed_abs, tag = 'smem constant byte address 0x4 - core index']
  #allocation1 [shape = 'u32[144,128]{1,0:T(1,128)}', space=vmem, size = 0x12000, scoped, tag = 'internal scratch']
  #allocation2 [shape = 's32[4]{0}', space=sflag, size = 0x10, scoped, tag = 'scratch operand']
  #allocation3 [shape = 's32[1]{0}', space=sflag, size = 0x4, scoped, tag = 'scoped memory for tpu_custom_call.1']
  #allocation4 [shape = 'u8[512]{0}', space=smem, size = 0x200, scoped, tag = 'prefetched SMEM operand 0']
  #allocation5 [shape = 's32[]', space=sflag, size = 0x4, offset = 0, fixed_abs, tag = 'sflag constant byte address 0x0 - dummy sync flag']
  #allocation7 [shape = 's32[]', space=sflag, size = 0x4, offset = 0, fixed_abs, tag = 'sflag constant byte address 0x0 - dummy sync flag']
  #allocation9 [shape = 's32[]', space=sflag, size = 0x4, offset = 0, fixed_abs, tag = 'sflag constant byte address 0x0 - dummy sync flag']
  #allocation11 [shape = 's32[]', space=sflag, size = 0x4, offset = 0, fixed_abs, tag = 'sflag constant byte address 0x0 - dummy sync flag']
  #allocation13 [shape = 's32[]', space=sflag, size = 0x4, offset = 0, fixed_abs, tag = 'sflag constant byte address 0x0 - dummy sync flag']
  #allocation15 [shape = 's32[]', space=sflag, size = 0x4, offset = 0, fixed_abs, tag = 'sflag constant byte address 0x0 - dummy sync flag']
  #allocation17 [shape = 's32[]', space=sflag, size = 0x4, offset = 0, fixed_abs, tag = 'sflag constant byte address 0x0 - dummy sync flag']
  #allocation19 [shape = 's32[]', space=sflag, size = 0x4, offset = 0, fixed_abs, tag = 'sflag constant byte address 0x0 - dummy sync flag']
  %s0 = inlined_call_operand.hbm [shape: s32[16], index: 0, kind: input, shape index: {}]
  %s1 = inlined_call_operand.hbm [shape: f32[1024,512], index: 1, kind: input, shape index: {}]
  %s2 = inlined_call_operand.hbm [shape: f32[16,512], index: 2, kind: output, shape index: {}]
  %s3 = sld [smem:[#allocation0]]
  $region9: #{tpu_custom_call.1} parent=0
    _
  %s5 = ssub.s32 1, %s3
  %s6 = scalar_select 0, %s5, %s3
  %8 = dma.hbm_to_smem %s0, 16, [#allocation4], [#allocation3]
  %9 = dma.done [#allocation3], 16
  %10 = sfence
  loop: start=0, step=1, limit=2
  $region2: #{tpu_custom_call.1} parent=0 // loop_pre_header
    _
  $region3: #{tpu_custom_call.1} parent=0 // loop_header
    %s12 = sphi 0, %s16
    %p13 = scmp.ge.s32.totalorder %s12, 2
  $region4: #{tpu_custom_call.1} parent=0 // loop_header_branch
    %15 = sbr.rel (%p13) target = $region8
  $region5: #{tpu_custom_call.1} parent=0 // loop_body
    #allocation6 [shape = 'u32[3]{0}', space=smem, size = 0xc, scoped, tag = 'DMA stride descriptor']
    #allocation8 [shape = 'u32[3]{0}', space=smem, size = 0xc, scoped, tag = 'DMA stride descriptor']
    #allocation10 [shape = 'u32[3]{0}', space=smem, size = 0xc, scoped, tag = 'DMA stride descriptor']
    #allocation12 [shape = 'u32[3]{0}', space=smem, size = 0xc, scoped, tag = 'DMA stride descriptor']
    #allocation14 [shape = 'u32[3]{0}', space=smem, size = 0xc, scoped, tag = 'DMA stride descriptor']
    #allocation16 [shape = 'u32[3]{0}', space=smem, size = 0xc, scoped, tag = 'DMA stride descriptor']
    #allocation18 [shape = 'u32[3]{0}', space=smem, size = 0xc, scoped, tag = 'DMA stride descriptor']
    #allocation20 [shape = 'u32[3]{0}', space=smem, size = 0xc, scoped, tag = 'DMA stride descriptor']
    %s17 = sadd.s32 %s12, 1
    %s18 = smul.u32 %s12, 8
    %s19 = sld [smem:[#allocation4 + %s18]]
    %s20 = sshrl.u32 %s19, 3
    %s21 = sand.u32 %s19, 7
    %s22 = smul.u32 %s20, 32
    %s23 = sadd.s32 %s21, %s22
    %s24 = smul.addr %s23, 16
    %s25 = scalar_lea.hbm %s1, %s24
    %s26 = sshrl.u32 %s18, 3
    %s27 = sand.u32 %s18, 7
    %s28 = smul.u32 %s26, 32
    %s29 = sadd.s32 %s27, %s28
    %s30 = smul.addr %s29, 16
    %s31 = scalar_lea.hbm %s2, %s30
    %s33 = sshll.u32 1, 14
    %s34 = sxor.u32 4294967295, %s33
    %s37 = sshll.u32 3, 24
    %s38 = sxor.u32 4294967295, %s37
    %s39 = sand.u32 0, %s38
    %s41 = sor.u32 %s39, 0
    %44 = sst [smem:[#allocation6]] 128
    %s45 = scalar_lea.smem [#allocation6], 1
    %46 = sst [smem:[%s45]] 128
    %s47 = scalar_lea.smem [#allocation6], 2
    %48 = sst [smem:[%s47]] 1
    %50 = dma.general %s25, 64, %s31, [#allocation2], [#allocation5], [#allocation6], %s41, 0
    %s51 = sadd.s32 %s18, 1
    %s52 = sld [smem:[#allocation4 + %s51]]
    %s53 = sshrl.u32 %s52, 3
    %s54 = sand.u32 %s52, 7
    %s55 = smul.u32 %s53, 32
    %s56 = sadd.s32 %s54, %s55
    %s57 = smul.addr %s56, 16
    %s58 = scalar_lea.hbm %s1, %s57
    %s59 = sshrl.u32 %s51, 3
    %s60 = sand.u32 %s51, 7
    %s61 = smul.u32 %s59, 32
    %s62 = sadd.s32 %s60, %s61
    %s63 = smul.addr %s62, 16
    %s64 = scalar_lea.hbm %s2, %s63
    %s65 = scalar_lea.sflag [#allocation2], 1
    %s67 = sshll.u32 1, 14
    %s68 = sxor.u32 4294967295, %s67
    %s71 = sshll.u32 3, 24
    %s72 = sxor.u32 4294967295, %s71
    %s73 = sand.u32 0, %s72
    %s75 = sor.u32 %s73, 0
    %78 = sst [smem:[#allocation8]] 128
    %s79 = scalar_lea.smem [#allocation8], 1
    %80 = sst [smem:[%s79]] 128
    %s81 = scalar_lea.smem [#allocation8], 2
    %82 = sst [smem:[%s81]] 1
    %84 = dma.general %s58, 64, %s64, %s65, [#allocation7], [#allocation8], %s75, 0
    %s85 = sadd.s32 %s18, 2
    %s86 = sld [smem:[#allocation4 + %s85]]
    %s87 = sshrl.u32 %s86, 3
    %s88 = sand.u32 %s86, 7
    %s89 = smul.u32 %s87, 32
    %s90 = sadd.s32 %s88, %s89
    %s91 = smul.addr %s90, 16
    %s92 = scalar_lea.hbm %s1, %s91
    %s93 = sshrl.u32 %s85, 3
    %s94 = sand.u32 %s85, 7
    %s95 = smul.u32 %s93, 32
    %s96 = sadd.s32 %s94, %s95
    %s97 = smul.addr %s96, 16
    %s98 = scalar_lea.hbm %s2, %s97
    %s99 = scalar_lea.sflag [#allocation2], 2
    %s101 = sshll.u32 1, 14
    %s102 = sxor.u32 4294967295, %s101
    %s105 = sshll.u32 3, 24
    %s106 = sxor.u32 4294967295, %s105
    %s107 = sand.u32 0, %s106
    %s109 = sor.u32 %s107, 0
    %112 = sst [smem:[#allocation10]] 128
    %s113 = scalar_lea.smem [#allocation10], 1
    %114 = sst [smem:[%s113]] 128
    %s115 = scalar_lea.smem [#allocation10], 2
    %116 = sst [smem:[%s115]] 1
    %118 = dma.general %s92, 64, %s98, %s99, [#allocation9], [#allocation10], %s109, 0
    %s119 = sadd.s32 %s18, 3
    %s120 = sld [smem:[#allocation4 + %s119]]
    %s121 = sshrl.u32 %s120, 3
    %s122 = sand.u32 %s120, 7
    %s123 = smul.u32 %s121, 32
    %s124 = sadd.s32 %s122, %s123
    %s125 = smul.addr %s124, 16
    %s126 = scalar_lea.hbm %s1, %s125
    %s127 = sshrl.u32 %s119, 3
    %s128 = sand.u32 %s119, 7
    %s129 = smul.u32 %s127, 32
    %s130 = sadd.s32 %s128, %s129
    %s131 = smul.addr %s130, 16
    %s132 = scalar_lea.hbm %s2, %s131
    %s133 = scalar_lea.sflag [#allocation2], 3
    %s135 = sshll.u32 1, 14
    %s136 = sxor.u32 4294967295, %s135
    %s139 = sshll.u32 3, 24
    %s140 = sxor.u32 4294967295, %s139
    %s141 = sand.u32 0, %s140
    %s143 = sor.u32 %s141, 0
    %146 = sst [smem:[#allocation12]] 128
    %s147 = scalar_lea.smem [#allocation12], 1
    %148 = sst [smem:[%s147]] 128
    %s149 = scalar_lea.smem [#allocation12], 2
    %150 = sst [smem:[%s149]] 1
    %152 = dma.general %s126, 64, %s132, %s133, [#allocation11], [#allocation12], %s143, 0
    %s153 = sadd.s32 %s18, 4
    %s154 = sld [smem:[#allocation4 + %s153]]
    %s155 = sld [smem:[#allocation4 + %s18]]
    %157 = dma.done [#allocation2], 64
    %s158 = sshrl.u32 %s154, 3
    %s159 = sand.u32 %s154, 7
    %s160 = smul.u32 %s158, 32
    %s161 = sadd.s32 %s159, %s160
    %s162 = smul.addr %s161, 16
    %s163 = scalar_lea.hbm %s1, %s162
    %s164 = sshrl.u32 %s153, 3
    %s165 = sand.u32 %s153, 7
    %s166 = smul.u32 %s164, 32
    %s167 = sadd.s32 %s165, %s166
    %s168 = smul.addr %s167, 16
    %s169 = scalar_lea.hbm %s2, %s168
    %s171 = sshll.u32 1, 14
    %s172 = sxor.u32 4294967295, %s171
    %s175 = sshll.u32 3, 24
    %s176 = sxor.u32 4294967295, %s175
    %s177 = sand.u32 0, %s176
    %s179 = sor.u32 %s177, 0
    %182 = sst [smem:[#allocation14]] 128
    %s183 = scalar_lea.smem [#allocation14], 1
    %184 = sst [smem:[%s183]] 128
    %s185 = scalar_lea.smem [#allocation14], 2
    %186 = sst [smem:[%s185]] 1
    %188 = dma.general %s163, 64, %s169, [#allocation2], [#allocation13], [#allocation14], %s179, 0
    %s189 = sadd.s32 %s18, 5
    %s190 = sld [smem:[#allocation4 + %s189]]
    %s191 = sld [smem:[#allocation4 + %s51]]
    %193 = dma.done %s65, 64
    %s194 = sshrl.u32 %s190, 3
    %s195 = sand.u32 %s190, 7
    %s196 = smul.u32 %s194, 32
    %s197 = sadd.s32 %s195, %s196
    %s198 = smul.addr %s197, 16
    %s199 = scalar_lea.hbm %s1, %s198
    %s200 = sshrl.u32 %s189, 3
    %s201 = sand.u32 %s189, 7
    %s202 = smul.u32 %s200, 32
    %s203 = sadd.s32 %s201, %s202
    %s204 = smul.addr %s203, 16
    %s205 = scalar_lea.hbm %s2, %s204
    %s207 = sshll.u32 1, 14
    %s208 = sxor.u32 4294967295, %s207
    %s211 = sshll.u32 3, 24
    %s212 = sxor.u32 4294967295, %s211
    %s213 = sand.u32 0, %s212
    %s215 = sor.u32 %s213, 0
    %218 = sst [smem:[#allocation16]] 128
    %s219 = scalar_lea.smem [#allocation16], 1
    %220 = sst [smem:[%s219]] 128
    %s221 = scalar_lea.smem [#allocation16], 2
    %222 = sst [smem:[%s221]] 1
    %224 = dma.general %s199, 64, %s205, %s65, [#allocation15], [#allocation16], %s215, 0
    %s225 = sadd.s32 %s18, 6
    %s226 = sld [smem:[#allocation4 + %s225]]
    %s227 = sld [smem:[#allocation4 + %s85]]
    %229 = dma.done %s99, 64
    %s230 = sshrl.u32 %s226, 3
    %s231 = sand.u32 %s226, 7
    %s232 = smul.u32 %s230, 32
    %s233 = sadd.s32 %s231, %s232
    %s234 = smul.addr %s233, 16
    %s235 = scalar_lea.hbm %s1, %s234
    %s236 = sshrl.u32 %s225, 3
    %s237 = sand.u32 %s225, 7
    %s238 = smul.u32 %s236, 32
    %s239 = sadd.s32 %s237, %s238
    %s240 = smul.addr %s239, 16
    %s241 = scalar_lea.hbm %s2, %s240
    %s243 = sshll.u32 1, 14
    %s244 = sxor.u32 4294967295, %s243
    %s247 = sshll.u32 3, 24
    %s248 = sxor.u32 4294967295, %s247
    %s249 = sand.u32 0, %s248
    %s251 = sor.u32 %s249, 0
    %254 = sst [smem:[#allocation18]] 128
    %s255 = scalar_lea.smem [#allocation18], 1
    %256 = sst [smem:[%s255]] 128
    %s257 = scalar_lea.smem [#allocation18], 2
    %258 = sst [smem:[%s257]] 1
    %260 = dma.general %s235, 64, %s241, %s99, [#allocation17], [#allocation18], %s251, 0
    %s261 = sadd.s32 %s18, 7
    %s262 = sld [smem:[#allocation4 + %s261]]
    %s263 = sld [smem:[#allocation4 + %s119]]
    %265 = dma.done %s133, 64
    %s266 = sshrl.u32 %s262, 3
    %s267 = sand.u32 %s262, 7
    %s268 = smul.u32 %s266, 32
    %s269 = sadd.s32 %s267, %s268
    %s270 = smul.addr %s269, 16
    %s271 = scalar_lea.hbm %s1, %s270
    %s272 = sshrl.u32 %s261, 3
    %s273 = sand.u32 %s261, 7
    %s274 = smul.u32 %s272, 32
    %s275 = sadd.s32 %s273, %s274
    %s276 = smul.addr %s275, 16
    %s277 = scalar_lea.hbm %s2, %s276
    %s279 = sshll.u32 1, 14
    %s280 = sxor.u32 4294967295, %s279
    %s283 = sshll.u32 3, 24
    %s284 = sxor.u32 4294967295, %s283
    %s285 = sand.u32 0, %s284
    %s287 = sor.u32 %s285, 0
    %290 = sst [smem:[#allocation20]] 128
    %s291 = scalar_lea.smem [#allocation20], 1
    %292 = sst [smem:[%s291]] 128
    %s293 = scalar_lea.smem [#allocation20], 2
    %294 = sst [smem:[%s293]] 1
    %296 = dma.general %s271, 64, %s277, %s133, [#allocation19], [#allocation20], %s287, 0
    %s297 = sld [smem:[#allocation4 + %s153]]
    %299 = dma.done [#allocation2], 64
    %s300 = sld [smem:[#allocation4 + %s189]]
    %302 = dma.done %s65, 64
    %s303 = sld [smem:[#allocation4 + %s225]]
    %305 = dma.done %s99, 64
    %s306 = sld [smem:[#allocation4 + %s261]]
    %308 = dma.done %s133, 64
  $region6: #{tpu_custom_call.1} parent=0 // loop_footer
    %s16 = sadd.s32 1, %s12
  $region7: #{tpu_custom_call.1} parent=0 // loop_footer_branch
    %11 = sbr.rel target = $region3
  $region8: #{tpu_custom_call.1} parent=0 // loop_exit
    _
  %309 = vsyncmov [#allocation2]
  %s310 = vpop.sfrf %309
  %p311 = scmp.eq.s32.totalorder %s310, 0
  %p312 = pneg %p311
  %314 = shalt.err (%p312)
  %s315 = scalar_lea.sflag [#allocation2], 1
  %316 = vsyncmov %s315
  %s317 = vpop.sfrf %316
  %p318 = scmp.eq.s32.totalorder %s317, 0
  %p319 = pneg %p318
  %321 = shalt.err (%p319)
  %s322 = scalar_lea.sflag [#allocation2], 2
  %323 = vsyncmov %s322
  %s324 = vpop.sfrf %323
  %p325 = scmp.eq.s32.totalorder %s324, 0
  %p326 = pneg %p325
  %328 = shalt.err (%p326)
  %s329 = scalar_lea.sflag [#allocation2], 3
  %330 = vsyncmov %s329
  %s331 = vpop.sfrf %330
  %p332 = scmp.eq.s32.totalorder %s331, 0
  %p333 = pneg %p332
  %335 = shalt.err (%p333)

</llo_original>
